<compile_context>
chip_gen: v7x
topology: tpu7x:2x2x1
jax: 0.10.0
libtpu: 0.0.40
codegen_flags: <defaults>
</compile_context>

<pallas_src>
import functools

import jax
import jax.numpy as jnp
from jax import lax
from jax.experimental import pallas as pl
from jax.experimental.pallas import tpu as pltpu


def _round_up(x, m):
    return ((x + m - 1) // m) * m


def _cdiv(a, b):
    return -(-a // b)


# ----------------------------------------------------------------------------
# Pallas kernel: fused im2col conv (+ modality sum + bias) on one spatial tile.
# ----------------------------------------------------------------------------
def _magnet_conv_kernel(x_ref, h_ref, w_ref, b_ref, o_ref, xbuf, colbuf, *, w_pad):
    # x_ref : (M, tile_j)           main flattened-padded-image tile (lane aligned)
    # h_ref : (M, halo_pad)         halo = first lanes of the NEXT tile (tiny)
    # w_ref : (C, 9*M)              packed per-tap weights (grid-invariant, resident)
    # b_ref : (C, 1)                bias summed over modalities (f32)
    # o_ref : (C, tile_j)           lane-dense block of the final [B, C, J] output
    # xbuf  : (M, tile_j+halo_pad)  VMEM scratch: contiguous [tile | halo] slab
    # colbuf: (9*M, tile_j)         VMEM scratch: fused-im2col matrix
    m, tile_j = x_ref.shape

    # Assemble the contiguous slab once per step (halo store is tiny/masked).
    xbuf[:, :tile_j] = x_ref[...]
    xbuf[:, tile_j:] = h_ref[...]

    # Fused im2col: 9 statically shifted copies stacked along the contraction dim.
    for kh in range(3):
        for kw in range(3):
            k = kh * 3 + kw
            off = kh * w_pad + kw            # static lane offset of this 3x3 tap
            colbuf[k * m:(k + 1) * m, :] = xbuf[:, off:off + tile_j]

    # Single MXU matmul with K = 9*M, f32 accumulation.
    acc = jnp.dot(w_ref[...], colbuf[...], preferred_element_type=jnp.float32)
    o_ref[...] = (acc + b_ref[...]).astype(o_ref.dtype)


def _conv_fused_pallas(x_flat, halos, w2, b2, *, w_pad, tile_j, out_dtype):
    """x_flat: [B, M, j_total+halo_pad], halos: [B, T, M, halo_pad],
    w2: [C, 9*M], b2: [C, 1]  ->  [B, C, T*tile_j]."""
    b, m, _ = x_flat.shape
    _, num_t, _, halo_pad = halos.shape
    c_out, k_dim = w2.shape
    j_total = num_t * tile_j

    kernel = functools.partial(_magnet_conv_kernel, w_pad=w_pad)
    isz = jnp.dtype(x_flat.dtype).itemsize
    osz = jnp.dtype(out_dtype).itemsize
    flops = 2 * b * num_t * tile_j * k_dim * c_out
    bytes_accessed = (b * m * j_total * isz            # main tile reads
                      + halos.size * isz               # tiny halo reads
                      + w2.size * jnp.dtype(w2.dtype).itemsize
                      + b2.size * 4
                      + b * c_out * j_total * osz)     # output writeback

    return pl.pallas_call(
        kernel,
        out_shape=jax.ShapeDtypeStruct((b, c_out, j_total), out_dtype),
        grid_spec=pltpu.PrefetchScalarGridSpec(
            num_scalar_prefetch=0,
            grid=(b, num_t),
            in_specs=[
                pl.BlockSpec((None, m, tile_j), lambda i, t: (i, 0, t)),
                pl.BlockSpec((None, None, m, halo_pad), lambda i, t: (i, t, 0, 0)),
                pl.BlockSpec((c_out, k_dim), lambda i, t: (0, 0)),
                pl.BlockSpec((c_out, 1), lambda i, t: (0, 0)),
            ],
            out_specs=pl.BlockSpec((None, c_out, tile_j), lambda i, t: (i, 0, t)),
            scratch_shapes=[
                pltpu.VMEM((m, tile_j + halo_pad), x_flat.dtype),
                pltpu.VMEM((k_dim, tile_j), x_flat.dtype),
            ],
        ),
        compiler_params=pltpu.CompilerParams(
            dimension_semantics=("parallel", "parallel")),
        cost_estimate=pl.CostEstimate(flops=flops, transcendentals=0,
                                      bytes_accessed=bytes_accessed),
    )(x_flat, halos, w2, b2)


# ----------------------------------------------------------------------------
# Glue: weight packing, fused-im2col data prep, MAGNET routing logic.
# ----------------------------------------------------------------------------
def _pack_weights(conv_w, conv_b, modality_ids):
    """conv_w: [T, C, 1, 3, 3], conv_b: [T, C] -> w2: [C, 9*M], b2: [C, 1].

    Column order of w2 is tap-major (k = kh*3+kw), modality-minor — matching the
    row order the kernel writes into its fused-im2col scratch.
    """
    ids = jnp.asarray(modality_ids)
    wsel = conv_w[ids][:, :, 0, :, :]                       # [M, C, 3, 3]
    c_out = wsel.shape[1]
    w2 = jnp.transpose(wsel, (1, 2, 3, 0))                  # [C, kh, kw, M]
    w2 = w2.reshape(c_out, 9 * len(modality_ids))           # [C, 9*M]
    b2 = jnp.sum(conv_b[ids], axis=0).reshape(-1, 1).astype(jnp.float32)
    return w2, b2


def magnet_forward(x_in, conv_w, conv_b, target_dict, target=0,
                   tile_j_max=8192, vmem_budget_bytes=10 * 1024 * 1024,
                   compute_dtype=None, out_dtype=None):
    """MAGNET.forward for modules = [Conv2d(1, C_out, 3, padding=1)] * N.

    x_in: [B, M, H, W] (NCHW).  Returns [B, C_out, H, W].
    """
    b, m, h, w = x_in.shape
    c_out = conv_w.shape[1]
    keys = list(target_dict.keys())
    out_dtype = x_in.dtype if out_dtype is None else out_dtype

    # --- MAGNET routing (mirrors the PyTorch control flow) ---
    if m > 1:
        if m > len(keys):
            ids, chans = keys, keys                      # x = x_in[:, t:t+1, ...]
        elif m == len(keys):
            ids, chans = keys, list(range(len(keys)))    # x = x_in[:, i:i+1, ...]
        else:
            raise ValueError(
                "No modality found in the input: fewer input channels than "
                "entries in target_dict.")
        for c in chans:
            if c >= m:
                raise ValueError(f"No modality channel {c} found in the input.")
        x_sel = x_in[:, jnp.asarray(chans), :, :]        # [B, M', H, W]
    else:
        ids = [target]                                   # single-module path
        x_sel = x_in
    n_mod = len(ids)

    w2, b2 = _pack_weights(conv_w, conv_b, ids)          # [C, 9*M'], [C, 1]
    if compute_dtype is not None:                        # optional bf16 reads
        x_sel = x_sel.astype(compute_dtype)
        w2 = w2.astype(compute_dtype)

    # --- fused-im2col geometry on the flattened zero-padded image ---
    w_pad = w + 2
    s_valid = (h + 2) * w_pad             # flattened padded image length
    j_count = h * w_pad                   # output positions we must cover
    halo = 2 * w_pad + 2                  # extra lanes a tile's taps can reach
    halo_pad = _round_up(halo, 128)

    # tile_j: lane-dense, derived from a conservative (v5e-scoped-VMEM-safe)
    # per-position byte budget, capped at tile_j_max.
    isz = jnp.dtype(x_sel.dtype).itemsize
    osz = jnp.dtype(out_dtype).itemsize
    bytes_per_j = (2 * n_mod * isz        # double-buffered main input block
                   + 2 * c_out * osz      # double-buffered output block
                   + n_mod * isz          # xbuf scratch
                   + 9 * n_mod * isz      # fused-im2col scratch
                   + c_out * 4)           # f32 matmul epilogue
    tile_budget = max(128, (vmem_budget_bytes // bytes_per_j) // 128 * 128)
    tile_j = min(_round_up(j_count, 128), tile_budget, tile_j_max)
    # v7x has 2 TensorCores: give the parallel grid >= 2 steps when possible.
    if b * _cdiv(j_count, tile_j) < 2 and j_count > 128:
        tile_j = max(128, _round_up(_cdiv(j_count, 2), 128))
    num_t = _cdiv(j_count, tile_j)
    j_total = num_t * tile_j
    l_flat = j_total + halo_pad

    # Flatten the zero-padded image; pad the tail so every tile + halo is in range.
    x_pad = jnp.pad(x_sel, ((0, 0), (0, 0), (1, 1), (1, 1)))      # [B,M',H+2,W+2]
    x_flat = x_pad.reshape(b, n_mod, s_valid)
    x_flat = jnp.pad(x_flat, ((0, 0), (0, 0), (0, l_flat - s_valid)))
    # Tiny per-tile halo tensor (the first halo_pad lanes of the NEXT tile) —
    # replaces the old full overlapping-slab stack (no second copy of the input).
    halos = jnp.stack(
        [lax.slice_in_dim(x_flat, (t + 1) * tile_j, (t + 1) * tile_j + halo_pad,
                          axis=2)
         for t in range(num_t)], axis=1)                          # [B,T,M',halo_pad]

    out = _conv_fused_pallas(x_flat, halos, w2, b2, w_pad=w_pad,
                             tile_j=tile_j, out_dtype=out_dtype)  # [B,C,j_total]

    # Un-flatten: j = row*(W+2) + col ; drop the 2 wrapped columns per row.
    out = out[:, :, :h * w_pad].reshape(b, c_out, h, w_pad)[:, :, :, :w]
    return out


# ----------------------------------------------------------------------------
# Pure-JAX reference (per-modality conv, sum over modality axis).
# ----------------------------------------------------------------------------
def magnet_reference(x_in, conv_w, conv_b, target_dict):
    b, m, h, w = x_in.shape
    outs = []
    for i, t in enumerate(target_dict):
        ch = t if m > len(target_dict) else i
        x = x_in[:, ch:ch + 1, :, :]
        y = lax.conv_general_dilated(
            x, conv_w[t], window_strides=(1, 1), padding=((1, 1), (1, 1)),
            dimension_numbers=("NCHW", "OIHW", "NCHW"))
        y = y + conv_b[t][None, :, None, None]
        outs.append(y[:, None])                                   # unsqueeze(1)
    return jnp.concatenate(outs, axis=1).sum(axis=1)


if __name__ == "__main__":
    B, M, H, W = 2, 4, 16, 16
    C_OUT = 8
    target_dict = {0: "ct", 1: "mri", 2: "pet", 3: "us"}

    key = jax.random.PRNGKey(0)
    kx, kw, kb = jax.random.split(key, 3)
    x_in = jax.random.normal(kx, (B, M, H, W), dtype=jnp.float32)
    # Per-modality Conv2d(1, C_OUT, 3, padding=1) parameters.
    conv_w = 0.1 * jax.random.normal(kw, (M, C_OUT, 1, 3, 3), dtype=jnp.float32)
    conv_b = 0.1 * jax.random.normal(kb, (M, C_OUT), dtype=jnp.float32)

    y_ref = magnet_reference(x_in, conv_w, conv_b, target_dict)

    # f32 path (default) — tight tolerance.
    fwd = jax.jit(functools.partial(magnet_forward, target_dict=target_dict))
    y = jax.block_until_ready(fwd(x_in, conv_w, conv_b))
    assert y.shape == (B, C_OUT, H, W), y.shape
    assert jnp.allclose(y, y_ref, atol=1e-4, rtol=1e-4), \
        float(jnp.max(jnp.abs(y - y_ref)))

    # bf16-read path (f32 accumulation) — looser tolerance.
    fwd_bf16 = jax.jit(functools.partial(magnet_forward, target_dict=target_dict,
                                         compute_dtype=jnp.bfloat16))
    y_bf16 = jax.block_until_ready(fwd_bf16(x_in, conv_w, conv_b))
    assert y_bf16.shape == (B, C_OUT, H, W), y_bf16.shape
    assert jnp.allclose(y_bf16, y_ref, atol=5e-2, rtol=5e-2), \
        float(jnp.max(jnp.abs(y_bf16 - y_ref)))

    print("KERNEL_OK")
</pallas_src>

<mosaic_0001>
module attributes {stable_mosaic.version = 11 : i64} {
  func.func @_magnet_conv_kernel(%arg0: i32, %arg1: i32, %arg2: memref<1x4x384xf32, #tpu.memory_space<vmem>>, %arg3: memref<1x1x4x128xf32, #tpu.memory_space<vmem>>, %arg4: memref<8x36xf32, #tpu.memory_space<vmem>>, %arg5: memref<8x1xf32, #tpu.memory_space<vmem>>, %arg6: memref<1x8x384xf32, #tpu.memory_space<vmem>>, %arg7: memref<4x512xf32, #tpu.memory_space<vmem>>, %arg8: memref<36x384xf32, #tpu.memory_space<vmem>>) attributes {dimension_semantics = [#tpu.dimension_semantics<parallel>, #tpu.dimension_semantics<parallel>], iteration_bounds = array<i64: 2, 1>, scalar_prefetch = 0 : i64, scratch_operands = 2 : i64, tpu.core_type = #tpu.core_type<tc>, window_params = [{transform_indices = @transform_0, window_bounds = array<i64: 1, 4, 384>}, {transform_indices = @transform_1, window_bounds = array<i64: 1, 1, 4, 128>}, {pipeline_mode = #tpu.pipeline_mode<synchronous>, transform_indices = @transform_2, window_bounds = array<i64: 8, 36>}, {pipeline_mode = #tpu.pipeline_mode<synchronous>, transform_indices = @transform_3, window_bounds = array<i64: 8, 1>}, {transform_indices = @transform_4, window_bounds = array<i64: 1, 8, 384>}]} {
    %c0 = arith.constant 0 : index
    %c0_0 = arith.constant 0 : index
    %c0_1 = arith.constant 0 : index
    %0 = vector.load %arg2[%c0, %c0_0, %c0_1] : memref<1x4x384xf32, #tpu.memory_space<vmem>>, vector<1x4x384xf32>
    %1 = vector.shape_cast %0 : vector<1x4x384xf32> to vector<4x384xf32>
    %c0_2 = arith.constant 0 : index
    %c0_3 = arith.constant 0 : index
    %2 = vector.load %arg7[%c0_2, %c0_3] : memref<4x512xf32, #tpu.memory_space<vmem>>, vector<4x384xf32>
    tpu.vector_store %arg7[%c0_2, %c0_3], %1 {strides = array<i32>} : memref<4x512xf32, #tpu.memory_space<vmem>>, vector<4x384xf32>,
    %c0_4 = arith.constant 0 : index
    %c0_5 = arith.constant 0 : index
    %c0_6 = arith.constant 0 : index
    %c0_7 = arith.constant 0 : index
    %3 = vector.load %arg3[%c0_4, %c0_5, %c0_6, %c0_7] : memref<1x1x4x128xf32, #tpu.memory_space<vmem>>, vector<1x1x4x128xf32>
    %4 = vector.shape_cast %3 : vector<1x1x4x128xf32> to vector<4x128xf32>
    %c0_8 = arith.constant 0 : index
    %c384 = arith.constant 384 : index
    %5 = vector.load %arg7[%c0_8, %c384] : memref<4x512xf32, #tpu.memory_space<vmem>>, vector<4x128xf32>
    tpu.vector_store %arg7[%c0_8, %c384], %4 {strides = array<i32>} : memref<4x512xf32, #tpu.memory_space<vmem>>, vector<4x128xf32>,
    %c0_9 = arith.constant 0 : index
    %c0_10 = arith.constant 0 : index
    %6 = vector.load %arg7[%c0_9, %c0_10] : memref<4x512xf32, #tpu.memory_space<vmem>>, vector<4x384xf32>
    %c0_11 = arith.constant 0 : index
    %c0_12 = arith.constant 0 : index
    %7 = vector.load %arg8[%c0_11, %c0_12] : memref<36x384xf32, #tpu.memory_space<vmem>>, vector<4x384xf32>
    tpu.vector_store %arg8[%c0_11, %c0_12], %6 {strides = array<i32>} : memref<36x384xf32, #tpu.memory_space<vmem>>, vector<4x384xf32>,
    %c0_13 = arith.constant 0 : index
    %c1 = arith.constant 1 : index
    %8 = vector.load %arg7[%c0_13, %c1] : memref<4x512xf32, #tpu.memory_space<vmem>>, vector<4x384xf32>
    %c4 = arith.constant 4 : index
    %c0_14 = arith.constant 0 : index
    %9 = vector.load %arg8[%c4, %c0_14] : memref<36x384xf32, #tpu.memory_space<vmem>>, vector<4x384xf32>
    tpu.vector_store %arg8[%c4, %c0_14], %8 {strides = array<i32>} : memref<36x384xf32, #tpu.memory_space<vmem>>, vector<4x384xf32>,
    %c0_15 = arith.constant 0 : index
    %c2 = arith.constant 2 : index
    %10 = vector.load %arg7[%c0_15, %c2] : memref<4x512xf32, #tpu.memory_space<vmem>>, vector<4x384xf32>
    %c8 = arith.constant 8 : index
    %c0_16 = arith.constant 0 : index
    %11 = vector.load %arg8[%c8, %c0_16] : memref<36x384xf32, #tpu.memory_space<vmem>>, vector<4x384xf32>
    tpu.vector_store %arg8[%c8, %c0_16], %10 {strides = array<i32>} : memref<36x384xf32, #tpu.memory_space<vmem>>, vector<4x384xf32>,
    %c0_17 = arith.constant 0 : index
    %c18 = arith.constant 18 : index
    %12 = vector.load %arg7[%c0_17, %c18] : memref<4x512xf32, #tpu.memory_space<vmem>>, vector<4x384xf32>
    %c12 = arith.constant 12 : index
    %c0_18 = arith.constant 0 : index
    %13 = vector.load %arg8[%c12, %c0_18] : memref<36x384xf32, #tpu.memory_space<vmem>>, vector<4x384xf32>
    tpu.vector_store %arg8[%c12, %c0_18], %12 {strides = array<i32>} : memref<36x384xf32, #tpu.memory_space<vmem>>, vector<4x384xf32>,
    %c0_19 = arith.constant 0 : index
    %c19 = arith.constant 19 : index
    %14 = vector.load %arg7[%c0_19, %c19] : memref<4x512xf32, #tpu.memory_space<vmem>>, vector<4x384xf32>
    %c16 = arith.constant 16 : index
    %c0_20 = arith.constant 0 : index
    %15 = vector.load %arg8[%c16, %c0_20] : memref<36x384xf32, #tpu.memory_space<vmem>>, vector<4x384xf32>
    tpu.vector_store %arg8[%c16, %c0_20], %14 {strides = array<i32>} : memref<36x384xf32, #tpu.memory_space<vmem>>, vector<4x384xf32>,
    %c0_21 = arith.constant 0 : index
    %c20 = arith.constant 20 : index
    %16 = vector.load %arg7[%c0_21, %c20] : memref<4x512xf32, #tpu.memory_space<vmem>>, vector<4x384xf32>
    %c20_22 = arith.constant 20 : index
    %c0_23 = arith.constant 0 : index
    %17 = vector.load %arg8[%c20_22, %c0_23] : memref<36x384xf32, #tpu.memory_space<vmem>>, vector<4x384xf32>
    tpu.vector_store %arg8[%c20_22, %c0_23], %16 {strides = array<i32>} : memref<36x384xf32, #tpu.memory_space<vmem>>, vector<4x384xf32>,
    %c0_24 = arith.constant 0 : index
    %c36 = arith.constant 36 : index
    %18 = vector.load %arg7[%c0_24, %c36] : memref<4x512xf32, #tpu.memory_space<vmem>>, vector<4x384xf32>
    %c24 = arith.constant 24 : index
    %c0_25 = arith.constant 0 : index
    %19 = vector.load %arg8[%c24, %c0_25] : memref<36x384xf32, #tpu.memory_space<vmem>>, vector<4x384xf32>
    tpu.vector_store %arg8[%c24, %c0_25], %18 {strides = array<i32>} : memref<36x384xf32, #tpu.memory_space<vmem>>, vector<4x384xf32>,
    %c0_26 = arith.constant 0 : index
    %c37 = arith.constant 37 : index
    %20 = vector.load %arg7[%c0_26, %c37] : memref<4x512xf32, #tpu.memory_space<vmem>>, vector<4x384xf32>
    %c28 = arith.constant 28 : index
    %c0_27 = arith.constant 0 : index
    %21 = vector.load %arg8[%c28, %c0_27] : memref<36x384xf32, #tpu.memory_space<vmem>>, vector<4x384xf32>
    tpu.vector_store %arg8[%c28, %c0_27], %20 {strides = array<i32>} : memref<36x384xf32, #tpu.memory_space<vmem>>, vector<4x384xf32>,
    %c0_28 = arith.constant 0 : index
    %c38 = arith.constant 38 : index
    %22 = vector.load %arg7[%c0_28, %c38] : memref<4x512xf32, #tpu.memory_space<vmem>>, vector<4x384xf32>
    %c32 = arith.constant 32 : index
    %c0_29 = arith.constant 0 : index
    %23 = vector.load %arg8[%c32, %c0_29] : memref<36x384xf32, #tpu.memory_space<vmem>>, vector<4x384xf32>
    tpu.vector_store %arg8[%c32, %c0_29], %22 {strides = array<i32>} : memref<36x384xf32, #tpu.memory_space<vmem>>, vector<4x384xf32>,
    %c0_30 = arith.constant 0 : index
    %c0_31 = arith.constant 0 : index
    %24 = vector.load %arg4[%c0_30, %c0_31] : memref<8x36xf32, #tpu.memory_space<vmem>>, vector<8x36xf32>
    %c0_32 = arith.constant 0 : index
    %c0_33 = arith.constant 0 : index
    %25 = vector.load %arg8[%c0_32, %c0_33] : memref<36x384xf32, #tpu.memory_space<vmem>>, vector<36x384xf32>
    %cst = arith.constant dense<0.000000e+00> : vector<8x384xf32>
    %26 = tpu.matmul %24, %25, %cst {dimension_numbers = #tpu.dot_dimension_numbers<[1], [0], [0], [1], [0, 0, 1, 1], [], []>} : vector<8x36xf32>, vector<36x384xf32>, vector<8x384xf32> -> vector<8x384xf32>
    %c0_34 = arith.constant 0 : index
    %c0_35 = arith.constant 0 : index
    %27 = vector.load %arg5[%c0_34, %c0_35] : memref<8x1xf32, #tpu.memory_space<vmem>>, vector<8x1xf32>
    %28 = vector.broadcast %27 : vector<8x1xf32> to vector<8x384xf32>
    %29 = arith.addf %26, %28 : vector<8x384xf32>
    %c0_36 = arith.constant 0 : index
    %c0_37 = arith.constant 0 : index
    %c0_38 = arith.constant 0 : index
    %30 = vector.load %arg6[%c0_36, %c0_37, %c0_38] : memref<1x8x384xf32, #tpu.memory_space<vmem>>, vector<1x8x384xf32>
    %31 = vector.shape_cast %30 : vector<1x8x384xf32> to vector<8x384xf32>
    %32 = vector.shape_cast %29 : vector<8x384xf32> to vector<1x8x384xf32>
    tpu.vector_store %arg6[%c0_36, %c0_37, %c0_38], %32 {strides = array<i32>} : memref<1x8x384xf32, #tpu.memory_space<vmem>>, vector<1x8x384xf32>,
    return
  }
  func.func @transform_0(%arg0: i32, %arg1: i32) -> (i32, i32, i32) {
    %c0_i32 = arith.constant 0 : i32
    %c0_i32_0 = arith.constant 0 : i32
    return %arg0, %c0_i32, %arg1 : i32, i32, i32
  }
  func.func @transform_1(%arg0: i32, %arg1: i32) -> (i32, i32, i32, i32) {
    %c0_i32 = arith.constant 0 : i32
    %c0_i32_0 = arith.constant 0 : i32
    %c0_i32_1 = arith.constant 0 : i32
    return %arg0, %arg1, %c0_i32, %c0_i32_0 : i32, i32, i32, i32
  }
  func.func @transform_2(%arg0: i32, %arg1: i32) -> (i32, i32) {
    %c0_i32 = arith.constant 0 : i32
    %c0_i32_0 = arith.constant 0 : i32
    %c0_i32_1 = arith.constant 0 : i32
    return %c0_i32, %c0_i32_0 : i32, i32
  }
  func.func @transform_3(%arg0: i32, %arg1: i32) -> (i32, i32) {
    %c0_i32 = arith.constant 0 : i32
    %c0_i32_0 = arith.constant 0 : i32
    %c0_i32_1 = arith.constant 0 : i32
    return %c0_i32, %c0_i32_0 : i32, i32
  }
  func.func @transform_4(%arg0: i32, %arg1: i32) -> (i32, i32, i32) {
    %c0_i32 = arith.constant 0 : i32
    %c0_i32_0 = arith.constant 0 : i32
    return %arg0, %c0_i32, %arg1 : i32, i32, i32
  }
}

</mosaic_0001>

<llo_original>
// kernel: magnet_forward.1
$region0: #{magnet_forward.1}
  #allocation0 [shape = 'u32[]', space=smem, size = 0x4, offset = 0x4, fixed_abs, tag = 'smem constant byte address 0x4 - core index']
  #allocation1 [shape = 'u32[144,128]{1,0:T(1,128)}', space=vmem, size = 0x12000, scoped, tag = 'internal scratch']
  #allocation2 [shape = 'f32[4,512]{1,0:T(4,128)}', space=vmem, size = 0x2000, scoped, tag = 'scratch operand']
  #allocation3 [shape = 'f32[36,384]{1,0:T(8,128)}', space=vmem, size = 0xf000, scoped, tag = 'scratch operand']
  %s0 = inlined_call_operand.vmem [shape: f32[2,4,512], index: 0, kind: input, shape index: {}]
  %s1 = inlined_call_operand.vmem [shape: f32[2,1,4,128], index: 1, kind: input, shape index: {}]
  %s2 = inlined_call_operand.vmem [shape: f32[8,36], index: 2, kind: input, shape index: {}]
  %s3 = inlined_call_operand.vmem [shape: f32[8,1], index: 3, kind: input, shape index: {}]
  %s4 = inlined_call_operand.vmem [shape: f32[2,8,384], index: 4, kind: output, shape index: {}]
  %s5 = sld [smem:[#allocation0]]
  $region49: #{magnet_forward.1} parent=0
    _
  %s7 = ssub.s32 1, %s5
  %s8 = scalar_select 0, %s7, %s5
  loop: start=0, step=1, limit=4
  $region2: #{magnet_forward.1} parent=0 // loop_pre_header
    _
  $region3: #{magnet_forward.1} parent=0 // loop_header
    %s10 = sphi 0, %s14
    %p11 = scmp.ge.s32.totalorder %s10, 4
    %s17 = sphi 0, %s29
    %s18 = sphi 0, %s25
    %s19 = sphi 0, %s17
    %s20 = sphi 0, %s18
    %s21 = sphi 0, %s19
    %s22 = sphi 0, %s20
    %s34 = sphi 0, %s36
    %s37 = sphi 0, %s34
    %s38 = sphi 0, %s37
    %s54 = sphi 0, %s38
    %s62 = sphi 0, %s64
    %s65 = sphi 0, %s62
    %s66 = sphi 0, %s65
    %s82 = sphi 0, %s66
    %s86 = sphi 0, %s86
    %s88 = sphi 0, %s86
    %s89 = sphi 0, %s88
    %s103 = sphi 0, %s89
    %s107 = sphi 0, %s107
    %s109 = sphi 0, %s107
    %s110 = sphi 0, %s109
    %s124 = sphi 0, %s110
    %s132 = sphi 0, %s134
    %s135 = sphi 0, %s132
    %s136 = sphi 0, %s135
    %s152 = sphi 0, %s136
  $region4: #{magnet_forward.1} parent=0 // loop_header_branch
    %13 = sbr.rel (%p11) target = $region8
  $region5: #{magnet_forward.1} parent=0 // loop_body
    %s15 = ssub.s32 %s10, 1
    %s16 = ssub.s32 %s10, 2
    %s23 = sadd.s32 1, %s18
    %p24 = scmp.ge.s32.totalorder %s23, 1
    %s25 = scalar_select %p24, 0, %s23
    %s26 = sadd.s32 1, %s17
    %s27 = scalar_select %p24, %s26, %s17
    %p28 = scmp.ge.s32.totalorder %s27, 2
    %s29 = scalar_select %p28, 0, %s27
    %s30 = ssub.s32 %s17, %s29
    %s31 = ssub.s32 %s18, %s25
    %s32 = sor.u32 %s30, %s31
    %p33 = scmp.eq.s32.totalorder %s32, 0
    %s35 = sadd.s32 %s34, 1
    %s36 = scalar_select %p33, %s34, %s35
    %p39 = pneg %p33
    %p40 = scmp.eq.s32.totalorder %s10, 1
    %p41 = por %p39, %p40
    %p42 = scmp.ne.s32.totalorder %s34, %s37
    %p43 = scmp.eq.s32.totalorder %s10, 0
    %p44 = por %p42, %p43
    %p45 = scmp.ne.s32.totalorder %s34, %s37
    %p46 = scmp.eq.s32.totalorder %s15, 1
    %p47 = por %p45, %p46
    %p48 = scmp.ne.s32.totalorder %s37, %s38
    %p49 = scmp.eq.s32.totalorder %s15, 0
    %p50 = por %p48, %p49
    %p51 = scmp.ne.s32.totalorder %s37, %s38
    %p52 = scmp.eq.s32.totalorder %s16, 1
    %p53 = por %p51, %p52
    %p55 = scmp.ne.s32.totalorder %s38, %s54
    %p56 = scmp.eq.s32.totalorder %s16, 0
    %p57 = por %p55, %p56
    %s58 = ssub.s32 %s17, %s29
    %s59 = ssub.s32 %s18, %s25
    %s60 = sor.u32 %s58, %s59
    %p61 = scmp.eq.s32.totalorder %s60, 0
    %s63 = sadd.s32 %s62, 1
    %s64 = scalar_select %p61, %s62, %s63
    %p67 = pneg %p61
    %p68 = scmp.eq.s32.totalorder %s10, 1
    %p69 = por %p67, %p68
    %p70 = scmp.ne.s32.totalorder %s62, %s65
    %p71 = scmp.eq.s32.totalorder %s10, 0
    %p72 = por %p70, %p71
    %p73 = scmp.ne.s32.totalorder %s62, %s65
    %p74 = scmp.eq.s32.totalorder %s15, 1
    %p75 = por %p73, %p74
    %p76 = scmp.ne.s32.totalorder %s65, %s66
    %p77 = scmp.eq.s32.totalorder %s15, 0
    %p78 = por %p76, %p77
    %p79 = scmp.ne.s32.totalorder %s65, %s66
    %p80 = scmp.eq.s32.totalorder %s16, 1
    %p81 = por %p79, %p80
    %p83 = scmp.ne.s32.totalorder %s66, %s82
    %p84 = scmp.eq.s32.totalorder %s16, 0
    %p85 = por %p83, %p84
    %s87 = sadd.s32 %s86, 1
    %p90 = scmp.eq.s32.totalorder %s10, 1
    %p91 = scmp.ne.s32.totalorder %s86, %s88
    %p92 = scmp.eq.s32.totalorder %s10, 0
    %p93 = por %p91, %p92
    %p94 = scmp.ne.s32.totalorder %s86, %s88
    %p95 = scmp.eq.s32.totalorder %s15, 1
    %p96 = por %p94, %p95
    %p97 = scmp.ne.s32.totalorder %s88, %s89
    %p98 = scmp.eq.s32.totalorder %s15, 0
    %p99 = por %p97, %p98
    %p100 = scmp.ne.s32.totalorder %s88, %s89
    %p101 = scmp.eq.s32.totalorder %s16, 1
    %p102 = por %p100, %p101
    %p104 = scmp.ne.s32.totalorder %s89, %s103
    %p105 = scmp.eq.s32.totalorder %s16, 0
    %p106 = por %p104, %p105
    %s108 = sadd.s32 %s107, 1
    %p111 = scmp.eq.s32.totalorder %s10, 1
    %p112 = scmp.ne.s32.totalorder %s107, %s109
    %p113 = scmp.eq.s32.totalorder %s10, 0
    %p114 = por %p112, %p113
    %p115 = scmp.ne.s32.totalorder %s107, %s109
    %p116 = scmp.eq.s32.totalorder %s15, 1
    %p117 = por %p115, %p116
    %p118 = scmp.ne.s32.totalorder %s109, %s110
    %p119 = scmp.eq.s32.totalorder %s15, 0
    %p120 = por %p118, %p119
    %p121 = scmp.ne.s32.totalorder %s109, %s110
    %p122 = scmp.eq.s32.totalorder %s16, 1
    %p123 = por %p121, %p122
    %p125 = scmp.ne.s32.totalorder %s110, %s124
    %p126 = scmp.eq.s32.totalorder %s16, 0
    %p127 = por %p125, %p126
    %s128 = ssub.s32 %s17, %s29
    %s129 = ssub.s32 %s18, %s25
    %s130 = sor.u32 %s128, %s129
    %p131 = scmp.eq.s32.totalorder %s130, 0
    %s133 = sadd.s32 %s132, 1
    %s134 = scalar_select %p131, %s132, %s133
    %p137 = pneg %p131
    %p138 = scmp.eq.s32.totalorder %s10, 1
    %p139 = por %p137, %p138
    %p140 = scmp.ne.s32.totalorder %s132, %s135
    %p141 = scmp.eq.s32.totalorder %s10, 0
    %p142 = por %p140, %p141
    %p143 = scmp.ne.s32.totalorder %s132, %s135
    %p144 = scmp.eq.s32.totalorder %s15, 1
    %p145 = por %p143, %p144
    %p146 = scmp.ne.s32.totalorder %s135, %s136
    %p147 = scmp.eq.s32.totalorder %s15, 0
    %p148 = por %p146, %p147
    %p149 = scmp.ne.s32.totalorder %s135, %s136
    %p150 = scmp.eq.s32.totalorder %s16, 1
    %p151 = por %p149, %p150
    %p153 = scmp.ne.s32.totalorder %s136, %s152
    %p154 = scmp.eq.s32.totalorder %s16, 0
    %p155 = por %p153, %p154
    %p156 = scmp.le.s32.totalorder 1, %s10
    %p157 = scmp.lt.s32.totalorder %s10, 3
    %p158 = pnand %p156, %p157
    %p159 = pneg %p158
    // Predicated region
    $region9: #{magnet_forward.1} parent=5 // pred_check
      _
    $region10: #{magnet_forward.1} parent=5 // pred_check_branch
      %161 = sbr.rel (%p158) target = $region12
    $region11: #{magnet_forward.1} parent=5 // pred_region
      %s162 = ssub.s32 %s10, 1
      // Predicated region
      $region13: #{magnet_forward.1} parent=11 // pred_check
        %p163 = pneg %p99
      $region14: #{magnet_forward.1} parent=11 // pred_check_branch
        %165 = sbr.rel (%p163) target = $region16
      $region15: #{magnet_forward.1} parent=11 // pred_region
        _
      $region16: #{magnet_forward.1} parent=11 // pred_fallthru
        _
      // Predicated region
      $region17: #{magnet_forward.1} parent=11 // pred_check
        %p166 = pneg %p120
      $region18: #{magnet_forward.1} parent=11 // pred_check_branch
        %168 = sbr.rel (%p166) target = $region20
      $region19: #{magnet_forward.1} parent=11 // pred_region
        _
      $region20: #{magnet_forward.1} parent=11 // pred_fallthru
        _
    $region12: #{magnet_forward.1} parent=5 // pred_fallthru
      _
    %p169 = scmp.lt.s32.totalorder %s10, 2
    // Predicated region
    $region21: #{magnet_forward.1} parent=5 // pred_check
      %p170 = pneg %p169
    $region22: #{magnet_forward.1} parent=5 // pred_check_branch
      %172 = sbr.rel (%p170) target = $region24
    $region23: #{magnet_forward.1} parent=5 // pred_region
      // Predicated region
      $region25: #{magnet_forward.1} parent=23 // pred_check
        %p173 = pneg %p44
      $region26: #{magnet_forward.1} parent=23 // pred_check_branch
        %175 = sbr.rel (%p173) target = $region28
      $region27: #{magnet_forward.1} parent=23 // pred_region
        %s176 = smul.u32 3, %s18
        %s177 = ssub.s32 4, %s176
        %p178 = scmp.lt.s32.totalorder %s177, 3
        %s179 = scalar_select %p178, %s177, 3
        %s180 = smul.u32 64, %s179
        %p181 = scmp.lt.s32.totalorder %s17, 1
        %s182 = scalar_select %p181, %s17, 1
        %p183 = scmp.lt.s32.totalorder %s176, 3
        %s184 = scalar_select %p183, %s176, 3
        %s185 = smul.addr %s182, 4
        %s186 = sadd.s32 %s184, %s185
        %s187 = smul.addr %s186, 4
        %s188 = scalar_lea.vmem %s0, %s187
        %s189 = smul.u32 3, %s18
        %s190 = ssub.s32 4, %s189
        %p191 = scmp.lt.s32.totalorder %s190, 3
        %s192 = scalar_select %p191, %s190, 3
        %s193 = smul.u32 64, %s192
      $region28: #{magnet_forward.1} parent=23 // pred_fallthru
        _
      // Predicated region
      $region29: #{magnet_forward.1} parent=23 // pred_check
        %p194 = pneg %p72
      $region30: #{magnet_forward.1} parent=23 // pred_check_branch
        %196 = sbr.rel (%p194) target = $region32
      $region31: #{magnet_forward.1} parent=23 // pred_region
        %p197 = scmp.lt.s32.totalorder %s17, 1
        %s198 = scalar_select %p197, %s17, 1
        %p199 = scmp.lt.s32.totalorder %s18, 0
        %s200 = scalar_select %p199, %s18, 0
        %s201 = sadd.s32 %s200, %s198
        %s202 = smul.addr %s201, 4
        %s203 = scalar_lea.vmem %s1, %s202
      $region32: #{magnet_forward.1} parent=23 // pred_fallthru
        _
    $region24: #{magnet_forward.1} parent=5 // pred_fallthru
      _
    %p204 = scmp.le.s32.totalorder 1, %s10
    %p205 = scmp.lt.s32.totalorder %s10, 3
    %p206 = pnand %p204, %p205
    %p207 = pneg %p206
    // Predicated region
    $region33: #{magnet_forward.1} parent=5 // pred_check
      _
    $region34: #{magnet_forward.1} parent=5 // pred_check_branch
      %209 = sbr.rel (%p206) target = $region36
    $region35: #{magnet_forward.1} parent=5 // pred_region
      %s210 = ssub.s32 %s10, 1
      %s211 = smul.u32 3, %s20
      %s212 = ssub.s32 4, %s211
      %p213 = scmp.lt.s32.totalorder %s212, 3
      %s214 = scalar_select %p213, %s212, 3
      %s215 = smul.u32 64, %s214
      %p216 = scmp.lt.s32.totalorder %s19, 1
      %s217 = scalar_select %p216, %s19, 1
      %p218 = scmp.lt.s32.totalorder %s211, 3
      %s219 = scalar_select %p218, %s211, 3
      %s220 = smul.addr %s217, 4
      %s221 = sadd.s32 %s219, %s220
      %s222 = smul.addr %s221, 4
      %s223 = scalar_lea.vmem %s0, %s222
      %p224 = pneg %p50
      %p225 = pneg %p47
      %p226 = scmp.lt.s32.totalorder %s19, 1
      %s227 = scalar_select %p226, %s19, 1
      %p228 = scmp.lt.s32.totalorder %s20, 0
      %s229 = scalar_select %p228, %s20, 0
      %s230 = sadd.s32 %s229, %s227
      %s231 = smul.addr %s230, 4
      %s232 = scalar_lea.vmem %s1, %s231
      %p233 = pneg %p78
      %p234 = pneg %p75
      %p235 = pneg %p99
      %p236 = pneg %p96
      %p237 = pneg %p120
      %p238 = pneg %p117
      %p239 = pneg %p148
      %p240 = pneg %p145
      %s241 = smul.u32 3, %s20
      %p242 = scmp.lt.s32.totalorder %s19, 1
      %s243 = scalar_select %p242, %s19, 1
      %p244 = scmp.lt.s32.totalorder %s241, 2
      %s245 = scalar_select %p244, %s241, 2
      %s246 = smul.addr %s243, 3
      %s247 = sadd.s32 %s245, %s246
      %s248 = smul.addr %s247, 8
      %s249 = scalar_lea.vmem %s4, %s248
      %s250 = smul.u32 3, %s20
      %s251 = ssub.s32 4, %s250
      %p252 = scmp.lt.s32.totalorder %s251, 3
      %s253 = scalar_select %p252, %s251, 3
      %s254 = smul.u32 64, %s253
      %p255 = scmp.lt.s32.totalorder %s19, 1
      %s256 = scalar_select %p255, %s19, 1
      %p257 = scmp.lt.s32.totalorder %s250, 3
      %s258 = scalar_select %p257, %s250, 3
      %s259 = smul.addr %s256, 4
      %s260 = sadd.s32 %s258, %s259
      %s261 = smul.addr %s260, 4
      %s262 = scalar_lea.vmem %s0, %s261
      %s263 = smul.u32 3, %s20
      %s264 = ssub.s32 4, %s263
      %p265 = scmp.lt.s32.totalorder %s264, 3
      %s266 = scalar_select %p265, %s264, 3
      %s267 = smul.u32 64, %s266
      %p268 = scmp.lt.s32.totalorder %s19, 1
      %s269 = scalar_select %p268, %s19, 1
      %p270 = scmp.lt.s32.totalorder %s20, 0
      %s271 = scalar_select %p270, %s20, 0
      %s272 = sadd.s32 %s271, %s269
      %s273 = smul.addr %s272, 4
      %s274 = scalar_lea.vmem %s1, %s273
      %s275 = smul.u32 3, %s20
      %p276 = scmp.lt.s32.totalorder %s19, 1
      %s277 = scalar_select %p276, %s19, 1
      %p278 = scmp.lt.s32.totalorder %s275, 2
      %s279 = scalar_select %p278, %s275, 2
      %s280 = smul.addr %s277, 3
      %s281 = sadd.s32 %s279, %s280
      %s282 = smul.addr %s281, 8
      %s283 = scalar_lea.vmem %s4, %s282
      %s284 = smul.u32 3, %s20
      %v285 = vld [vmem:[%s262] sm:$0xff]
      %v286 = vld [vmem:[%s262 + $0x8] sm:$0xf]
      %287 = vst [vmem:[#allocation2] sm:$0xff] %v285
      %288 = vst [vmem:[#allocation2 + $0x8] sm:$0xf] %v286
      %v289 = vld [vmem:[%s274] sm:$0xf]
      %290 = vst [vmem:[#allocation2 + $0xc] sm:$0xf] %v289
      %v291 = vld [vmem:[#allocation2] sm:$0xff]
      %v292 = vld [vmem:[#allocation2 + $0x8] sm:$0xf]
      %v294 = vcombine.high %v291, %v291
      %296 = vst [vmem:[#allocation3] sm:$0xf] %v291
      %297 = vst [vmem:[#allocation3 + $0x8] sm:$0xf] %v294
      %298 = vst [vmem:[#allocation3 + $0x10] sm:$0xf] %v292
      %v299 = vld [vmem:[#allocation2] sm:$0xff]
      %v300 = vld [vmem:[#allocation2 + $0x8] sm:$0xff]
      %v303 = vcombine.low %v299, %v299
      %v304 = vcombine.low %v300, %v300
      %305 = vrot.lane.b32.xlu0 %v303, 127
      %v306 = vpop.permute.xlu0 %305
      %307 = vrot.lane.b32.xlu0 %v299, 127
      %v308 = vpop.permute.xlu0 %307
      %309 = vrot.lane.b32.xlu0 %v304, 127
      %v310 = vpop.permute.xlu0 %309
      %311 = vrot.lane.b32.xlu0 %v300, 127
      %v312 = vpop.permute.xlu0 %311
      %vm313 = vcmask 1039360
      %v314 = vsel %vm313, %v306, %v308
      %v315 = vsel %vm313, %v308, %v310
      %v316 = vsel %vm313, %v310, %v312
      %320 = vst [vmem:[#allocation3] sm:$0xf0] %v314
      %321 = vst [vmem:[#allocation3 + $0x8] sm:$0xf0] %v315
      %322 = vst [vmem:[#allocation3 + $0x10] sm:$0xf0] %v316
      %v323 = vld [vmem:[#allocation2] sm:$0xff]
      %v324 = vld [vmem:[#allocation2 + $0x8] sm:$0xff]
      %v327 = vcombine.high %v323, %v323
      %v328 = vcombine.high %v324, %v324
      %329 = vrot.lane.b32.xlu0 %v323, 126
      %v330 = vpop.permute.xlu0 %329
      %331 = vrot.lane.b32.xlu0 %v327, 126
      %v332 = vpop.permute.xlu0 %331
      %333 = vrot.lane.b32.xlu0 %v324, 126
      %v334 = vpop.permute.xlu0 %333
      %335 = vrot.lane.b32.xlu0 %v328, 126
      %v336 = vpop.permute.xlu0 %335
      %vm337 = vcmask 1031168
      %v338 = vsel %vm337, %v330, %v332
      %v339 = vsel %vm337, %v332, %v334
      %v340 = vsel %vm337, %v334, %v336
      %344 = vst [vmem:[#allocation3 + $0x18] sm:$0xf] %v338
      %345 = vst [vmem:[#allocation3 + $0x20] sm:$0xf] %v339
      %346 = vst [vmem:[#allocation3 + $0x28] sm:$0xf] %v340
      %v347 = vld [vmem:[#allocation2] sm:$0xff]
      %v348 = vld [vmem:[#allocation2 + $0x8] sm:$0xff]
      %v351 = vcombine.low %v347, %v347
      %v352 = vcombine.low %v348, %v348
      %353 = vrot.lane.b32.xlu0 %v351, 110
      %v354 = vpop.permute.xlu0 %353
      %355 = vrot.lane.b32.xlu0 %v347, 110
      %v356 = vpop.permute.xlu0 %355
      %357 = vrot.lane.b32.xlu0 %v352, 110
      %v358 = vpop.permute.xlu0 %357
      %359 = vrot.lane.b32.xlu0 %v348, 110
      %v360 = vpop.permute.xlu0 %359
      %vm361 = vcmask 900096
      %v362 = vsel %vm361, %v354, %v356
      %v363 = vsel %vm361, %v356, %v358
      %v364 = vsel %vm361, %v358, %v360
      %368 = vst [vmem:[#allocation3 + $0x18] sm:$0xf0] %v362
      %369 = vst [vmem:[#allocation3 + $0x20] sm:$0xf0] %v363
      %370 = vst [vmem:[#allocation3 + $0x28] sm:$0xf0] %v364
      %v371 = vld [vmem:[#allocation2] sm:$0xff]
      %v372 = vld [vmem:[#allocation2 + $0x8] sm:$0xff]
      %v375 = vcombine.high %v371, %v371
      %v376 = vcombine.high %v372, %v372
      %377 = vrot.lane.b32.xlu0 %v371, 109
      %v378 = vpop.permute.xlu0 %377
      %379 = vrot.lane.b32.xlu0 %v375, 109
      %v380 = vpop.permute.xlu0 %379
      %381 = vrot.lane.b32.xlu0 %v372, 109
      %v382 = vpop.permute.xlu0 %381
      %383 = vrot.lane.b32.xlu0 %v376, 109
      %v384 = vpop.permute.xlu0 %383
      %vm385 = vcmask 891904
      %v386 = vsel %vm385, %v378, %v380
      %v387 = vsel %vm385, %v380, %v382
      %v388 = vsel %vm385, %v382, %v384
      %392 = vst [vmem:[#allocation3 + $0x30] sm:$0xf] %v386
      %393 = vst [vmem:[#allocation3 + $0x38] sm:$0xf] %v387
      %394 = vst [vmem:[#allocation3 + $0x40] sm:$0xf] %v388
      %v395 = vld [vmem:[#allocation2] sm:$0xff]
      %v396 = vld [vmem:[#allocation2 + $0x8] sm:$0xff]
      %v399 = vcombine.low %v395, %v395
      %v400 = vcombine.low %v396, %v396
      %401 = vrot.lane.b32.xlu0 %v399, 108
      %v402 = vpop.permute.xlu0 %401
      %403 = vrot.lane.b32.xlu0 %v395, 108
      %v404 = vpop.permute.xlu0 %403
      %405 = vrot.lane.b32.xlu0 %v400, 108
      %v406 = vpop.permute.xlu0 %405
      %407 = vrot.lane.b32.xlu0 %v396, 108
      %v408 = vpop.permute.xlu0 %407
      %vm409 = vcmask 883712
      %v410 = vsel %vm409, %v402, %v404
      %v411 = vsel %vm409, %v404, %v406
      %v412 = vsel %vm409, %v406, %v408
      %416 = vst [vmem:[#allocation3 + $0x30] sm:$0xf0] %v410
      %417 = vst [vmem:[#allocation3 + $0x38] sm:$0xf0] %v411
      %418 = vst [vmem:[#allocation3 + $0x40] sm:$0xf0] %v412
      %v419 = vld [vmem:[#allocation2] sm:$0xff]
      %v420 = vld [vmem:[#allocation2 + $0x8] sm:$0xff]
      %v423 = vcombine.high %v419, %v419
      %v424 = vcombine.high %v420, %v420
      %425 = vrot.lane.b32.xlu0 %v419, 92
      %v426 = vpop.permute.xlu0 %425
      %427 = vrot.lane.b32.xlu0 %v423, 92
      %v428 = vpop.permute.xlu0 %427
      %429 = vrot.lane.b32.xlu0 %v420, 92
      %v430 = vpop.permute.xlu0 %429
      %431 = vrot.lane.b32.xlu0 %v424, 92
      %v432 = vpop.permute.xlu0 %431
      %vm433 = vcmask 752640
      %v434 = vsel %vm433, %v426, %v428
      %v435 = vsel %vm433, %v428, %v430
      %v436 = vsel %vm433, %v430, %v432
      %440 = vst [vmem:[#allocation3 + $0x48] sm:$0xf] %v434
      %441 = vst [vmem:[#allocation3 + $0x50] sm:$0xf] %v435
      %442 = vst [vmem:[#allocation3 + $0x58] sm:$0xf] %v436
      %v443 = vld [vmem:[#allocation2] sm:$0xff]
      %v444 = vld [vmem:[#allocation2 + $0x8] sm:$0xff]
      %v447 = vcombine.low %v443, %v443
      %v448 = vcombine.low %v444, %v444
      %449 = vrot.lane.b32.xlu0 %v447, 91
      %v450 = vpop.permute.xlu0 %449
      %451 = vrot.lane.b32.xlu0 %v443, 91
      %v452 = vpop.permute.xlu0 %451
      %453 = vrot.lane.b32.xlu0 %v448, 91
      %v454 = vpop.permute.xlu0 %453
      %455 = vrot.lane.b32.xlu0 %v444, 91
      %v456 = vpop.permute.xlu0 %455
      %vm457 = vcmask 744448
      %v458 = vsel %vm457, %v450, %v452
      %v459 = vsel %vm457, %v452, %v454
      %v460 = vsel %vm457, %v454, %v456
      %464 = vst [vmem:[#allocation3 + $0x48] sm:$0xf0] %v458
      %465 = vst [vmem:[#allocation3 + $0x50] sm:$0xf0] %v459
      %466 = vst [vmem:[#allocation3 + $0x58] sm:$0xf0] %v460
      %v467 = vld [vmem:[#allocation2] sm:$0xff]
      %v468 = vld [vmem:[#allocation2 + $0x8] sm:$0xff]
      %v471 = vcombine.high %v467, %v467
      %v472 = vcombine.high %v468, %v468
      %473 = vrot.lane.b32.xlu0 %v467, 90
      %v474 = vpop.permute.xlu0 %473
      %475 = vrot.lane.b32.xlu0 %v471, 90
      %v476 = vpop.permute.xlu0 %475
      %477 = vrot.lane.b32.xlu0 %v468, 90
      %v478 = vpop.permute.xlu0 %477
      %479 = vrot.lane.b32.xlu0 %v472, 90
      %v480 = vpop.permute.xlu0 %479
      %vm481 = vcmask 736256
      %v482 = vsel %vm481, %v474, %v476
      %v483 = vsel %vm481, %v476, %v478
      %v484 = vsel %vm481, %v478, %v480
      %488 = vst [vmem:[#allocation3 + $0x60] sm:$0xf] %v482
      %489 = vst [vmem:[#allocation3 + $0x68] sm:$0xf] %v483
      %490 = vst [vmem:[#allocation3 + $0x70] sm:$0xf] %v484
      %v491 = vld [vmem:[%s2] sm:$0xff]
      %v492 = vld [vmem:[#allocation3] sm:$0xff]
      %v493 = vld [vmem:[#allocation3 + $0x8] sm:$0xff]
      %v494 = vld [vmem:[#allocation3 + $0x10] sm:$0xff]
      %v495 = vld [vmem:[#allocation3 + $0x18] sm:$0xff]
      %v496 = vld [vmem:[#allocation3 + $0x20] sm:$0xff]
      %v497 = vld [vmem:[#allocation3 + $0x28] sm:$0xff]
      %v498 = vld [vmem:[#allocation3 + $0x30] sm:$0xff]
      %v499 = vld [vmem:[#allocation3 + $0x38] sm:$0xff]
      %v500 = vld [vmem:[#allocation3 + $0x40] sm:$0xff]
      %v501 = vld [vmem:[#allocation3 + $0x48] sm:$0xff]
      %v502 = vld [vmem:[#allocation3 + $0x50] sm:$0xff]
      %v503 = vld [vmem:[#allocation3 + $0x58] sm:$0xff]
      %v504 = vld [vmem:[#allocation3 + $0x60] sm:$0xf]
      %v505 = vld [vmem:[#allocation3 + $0x68] sm:$0xf]
      %v506 = vld [vmem:[#allocation3 + $0x70] sm:$0xf]
      %v507 = vld [vmem:[%s3] sm:$0xff]
      %509 = vset.pattern.permute.xlu0 0
      %510 = vperm.xlu0 %509, %v507
      %v511 = vpop.permute.xlu0 %510
      %vm513 = vcmask 293888
      %v515 = vsel %vm513, %v491, 0
      %vm517 = vcmask 1043456
      %v519 = vsel %vm517, %v504, 0
      %v522 = vsel %vm517, %v505, 0
      %v525 = vsel %vm517, %v506, 0
      %527 = vmatprep.subr.mxu0 %v493
      %528 = vmatpush1.msra.mxu0 %v492
      %529 = vmatprep.subr.mxu0 %v496
      %530 = vmatpush1.msra.mxu0 %v495
      %531 = vmatprep.subr.mxu0 %v499
      %532 = vmatpush1.msra.mxu0 %v498
      %533 = vmatprep.subr.mxu0 %v502
      %534 = vmatpush1.msra.mxu0 %v501
      %535 = vmatprep.subr.mxu0 %v522
      %536 = vmatpush1.msra.mxu0 %v519
      %537 = vmatprep.subr.mxu0 0.0
      %538 = vmatpush1.msra.mxu0 0.0
      %539 = vmatprep.subr.mxu0 0.0
      %540 = vmatpush1.msra.mxu0 0.0
      %541 = vmatprep.subr.mxu0 0.0
      %542 = vmatpush1.msra.mxu0 0.0
      %543 = vmatprep.subr.mxu0 0.0
      %544 = vmatpush1.msra.mxu0 0.0
      %545 = vmatprep.subr.mxu0 0.0
      %546 = vmatpush1.msra.mxu0 0.0
      %547 = vmatprep.subr.mxu0 0.0
      %548 = vmatpush1.msra.mxu0 0.0
      %549 = vmatprep.subr.mxu0 0.0
      %550 = vmatpush1.msra.mxu0 0.0
      %551 = vmatprep.subr.mxu0 0.0
      %552 = vmatpush1.msra.mxu0 0.0
      %553 = vmatprep.subr.mxu0 0.0
      %554 = vmatpush1.msra.mxu0 0.0
      %555 = vmatprep.subr.mxu0 0.0
      %556 = vmatpush1.msra.mxu0 0.0
      %557 = vmatprep.subr.mxu0 0.0
      %558 = vmatpush1.msra.mxu0 0.0
      %559 = vmatprep.subr.mxu0 0.0
      %560 = vmatpush1.msra.mxu0 0.0
      %561 = vmatprep.subr.mxu0 0.0
      %562 = vmatpush1.msra.mxu0 0.0
      %563 = vmatprep.subr.mxu0 0.0
      %564 = vmatpush1.msra.mxu0 0.0
      %565 = vmatprep.subr.mxu0 0.0
      %566 = vmatpush1.msra.mxu0 0.0
      %567 = vmatprep.subr.mxu0 0.0
      %568 = vmatpush1.msra.mxu0 0.0
      %569 = vmatprep.subr.mxu0 0.0
      %570 = vmatpush1.msra.mxu0 0.0
      %571 = vmatprep.subr.mxu0 0.0
      %572 = vmatpush1.msra.mxu0 0.0
      %573 = vmatprep.subr.mxu0 0.0
      %574 = vmatpush1.msra.mxu0 0.0
      %575 = vmatprep.subr.mxu0 0.0
      %576 = vmatpush1.msra.mxu0 0.0
      %577 = vmatprep.subr.mxu0 0.0
      %578 = vmatpush1.msra.mxu0 0.0
      %579 = vmatprep.subr.mxu0 0.0
      %580 = vmatpush1.msra.mxu0 0.0
      %581 = vmatprep.subr.mxu0 0.0
      %582 = vmatpush1.msra.mxu0 0.0
      %583 = vmatprep.subr.mxu0 0.0
      %584 = vmatpush1.msra.mxu0 0.0
      %585 = vmatprep.subr.mxu0 0.0
      %586 = vmatpush1.msra.mxu0 0.0
      %587 = vmatprep.subr.mxu0 0.0
      %588 = vmatpush1.msra.mxu0 0.0
      %589 = vmatprep.subr.mxu0 0.0
      %590 = vmatpush1.msra.mxu0 0.0
      %591 = vmatprep.mubr.f32.mxu0 0.0
      %592 = vmatmul.mubr.f32.gmra.mrb[0].mxu0 %v515
      %v593 = vpop.f32.mrb[0].mxu0
      %v594 = vadd.f32 %v511, %v593
      %v595 = vpop.f32.mrb[0].mxu0
      %v596 = vadd.f32 %v511, %v595
      %597 = vdwg.mxu0
      %598 = vmatprep.subr.mxu0 0.0
      %599 = vmatpush1.msra.mxu0 %v494
      %600 = vmatprep.subr.mxu0 0.0
      %601 = vmatpush1.msra.mxu0 %v497
      %602 = vmatprep.subr.mxu0 0.0
      %603 = vmatpush1.msra.mxu0 %v500
      %604 = vmatprep.subr.mxu0 0.0
      %605 = vmatpush1.msra.mxu0 %v503
      %606 = vmatprep.subr.mxu0 0.0
      %607 = vmatpush1.msra.mxu0 %v525
      %608 = vmatprep.subr.mxu0 0.0
      %609 = vmatpush1.msra.mxu0 0.0
      %610 = vmatprep.subr.mxu0 0.0
      %611 = vmatpush1.msra.mxu0 0.0
      %612 = vmatprep.subr.mxu0 0.0
      %613 = vmatpush1.msra.mxu0 0.0
      %614 = vmatprep.subr.mxu0 0.0
      %615 = vmatpush1.msra.mxu0 0.0
      %616 = vmatprep.subr.mxu0 0.0
      %617 = vmatpush1.msra.mxu0 0.0
      %618 = vmatprep.subr.mxu0 0.0
      %619 = vmatpush1.msra.mxu0 0.0
      %620 = vmatprep.subr.mxu0 0.0
      %621 = vmatpush1.msra.mxu0 0.0
      %622 = vmatprep.subr.mxu0 0.0
      %623 = vmatpush1.msra.mxu0 0.0
      %624 = vmatprep.subr.mxu0 0.0
      %625 = vmatpush1.msra.mxu0 0.0
      %626 = vmatprep.subr.mxu0 0.0
      %627 = vmatpush1.msra.mxu0 0.0
      %628 = vmatprep.subr.mxu0 0.0
      %629 = vmatpush1.msra.mxu0 0.0
      %630 = vmatprep.subr.mxu0 0.0
      %631 = vmatpush1.msra.mxu0 0.0
      %632 = vmatprep.subr.mxu0 0.0
      %633 = vmatpush1.msra.mxu0 0.0
      %634 = vmatprep.subr.mxu0 0.0
      %635 = vmatpush1.msra.mxu0 0.0
      %636 = vmatprep.subr.mxu0 0.0
      %637 = vmatpush1.msra.mxu0 0.0
      %638 = vmatprep.subr.mxu0 0.0
      %639 = vmatpush1.msra.mxu0 0.0
      %640 = vmatprep.subr.mxu0 0.0
      %641 = vmatpush1.msra.mxu0 0.0
      %642 = vmatprep.subr.mxu0 0.0
      %643 = vmatpush1.msra.mxu0 0.0
      %644 = vmatprep.subr.mxu0 0.0
      %645 = vmatpush1.msra.mxu0 0.0
      %646 = vmatprep.subr.mxu0 0.0
      %647 = vmatpush1.msra.mxu0 0.0
      %648 = vmatprep.subr.mxu0 0.0
      %649 = vmatpush1.msra.mxu0 0.0
      %650 = vmatprep.subr.mxu0 0.0
      %651 = vmatpush1.msra.mxu0 0.0
      %652 = vmatprep.subr.mxu0 0.0
      %653 = vmatpush1.msra.mxu0 0.0
      %654 = vmatprep.subr.mxu0 0.0
      %655 = vmatpush1.msra.mxu0 0.0
      %656 = vmatprep.subr.mxu0 0.0
      %657 = vmatpush1.msra.mxu0 0.0
      %658 = vmatprep.subr.mxu0 0.0
      %659 = vmatpush1.msra.mxu0 0.0
      %660 = vmatprep.subr.mxu0 0.0
      %661 = vmatpush1.msra.mxu0 0.0
      %662 = vmatprep.mubr.f32.mxu0 0.0
      %663 = vmatmul.mubr.f32.gmra.mrb[0].mxu0 %v515
      %v664 = vpop.f32.mrb[0].mxu0
      %v665 = vadd.f32 %v511, %v664
      %v666 = vpop.f32.mrb[0].mxu0
      %667 = vdwg.mxu0
      %668 = vst [vmem:[%s283] sm:$0xff] %v594
      %669 = vst [vmem:[%s283 + $0x8] sm:$0xff] %v596
      %670 = vst [vmem:[%s283 + $0x10] sm:$0xff] %v665
      %s671 = smul.u32 3, %s20
      %p672 = scmp.lt.s32.totalorder %s19, 1
      %s673 = scalar_select %p672, %s19, 1
      %p674 = scmp.lt.s32.totalorder %s671, 2
      %s675 = scalar_select %p674, %s671, 2
      %s676 = smul.addr %s673, 3
      %s677 = sadd.s32 %s675, %s676
      %s678 = smul.addr %s677, 8
      %s679 = scalar_lea.vmem %s4, %s678
      // Predicated region
      $region37: #{magnet_forward.1} parent=35 // pred_check
        %p680 = pneg %p145
      $region38: #{magnet_forward.1} parent=35 // pred_check_branch
        %682 = sbr.rel (%p680) target = $region40
      $region39: #{magnet_forward.1} parent=35 // pred_region
        %s683 = smul.u32 3, %s20
      $region40: #{magnet_forward.1} parent=35 // pred_fallthru
        _
    $region36: #{magnet_forward.1} parent=5 // pred_fallthru
      _
    %p684 = scmp.le.s32.totalorder 2, %s10
    // Predicated region
    $region41: #{magnet_forward.1} parent=5 // pred_check
      %p685 = pneg %p684
    $region42: #{magnet_forward.1} parent=5 // pred_check_branch
      %687 = sbr.rel (%p685) target = $region44
    $region43: #{magnet_forward.1} parent=5 // pred_region
      %s688 = ssub.s32 %s10, 2
      // Predicated region
      $region45: #{magnet_forward.1} parent=43 // pred_check
        %p689 = pneg %p151
      $region46: #{magnet_forward.1} parent=43 // pred_check_branch
        %691 = sbr.rel (%p689) target = $region48
      $region47: #{magnet_forward.1} parent=43 // pred_region
        %s692 = smul.u32 3, %s22
        %p693 = scmp.lt.s32.totalorder %s21, 1
        %s694 = scalar_select %p693, %s21, 1
        %p695 = scmp.lt.s32.totalorder %s692, 2
        %s696 = scalar_select %p695, %s692, 2
        %s697 = smul.addr %s694, 3
        %s698 = sadd.s32 %s696, %s697
        %s699 = smul.addr %s698, 8
        %s700 = scalar_lea.vmem %s4, %s699
      $region48: #{magnet_forward.1} parent=43 // pred_fallthru
        _
    $region44: #{magnet_forward.1} parent=5 // pred_fallthru
      _
  $region6: #{magnet_forward.1} parent=0 // loop_footer
    %s14 = sadd.s32 1, %s10
  $region7: #{magnet_forward.1} parent=0 // loop_footer_branch
    %9 = sbr.rel target = $region3
  $region8: #{magnet_forward.1} parent=0 // loop_exit
    _

</llo_original>
